<compile_context>
chip_gen: v7x
topology: tpu7x:2x2x1
jax: 0.10.0
libtpu: 0.0.40
codegen_flags: <defaults>
</compile_context>

<pallas_src>
import functools

import jax
import jax.numpy as jnp
from jax.experimental import pallas as pl
from jax.experimental.pallas import tpu as pltpu


# ---------------------------------------------------------------------------
# Kernel 1: attention (sigmoid of pooled 1x1 conv) fused with the expert-mixing
# matmul.  Batched over N, grid-tiled over the flattened weight dimension M.
# ---------------------------------------------------------------------------
def _attn_mix_kernel(pooled_ref, wat_ref, ba_ref, wflat_ref, agg_ref):
    # pooled_ref: (N, Cin)      per-sample global-average-pooled activations
    # wat_ref:    (Cin, K)      attention 1x1-conv weight (transposed)
    # ba_ref:     (1, K)        attention 1x1-conv bias
    # wflat_ref:  (K, tile_m)   slice of the flattened expert weight bank
    # agg_ref:    (N, tile_m)   per-sample mixed conv weight (this M tile)
    #
    # The attention itself is tiny, so recomputing it per M-tile is negligible
    # compared with re-reading activations or re-staging the weight bank.
    logits = jnp.dot(pooled_ref[...], wat_ref[...],
                     preferred_element_type=jnp.float32) + ba_ref[...]
    att = jax.nn.sigmoid(logits)          # NB: reference uses sigmoid, not softmax
    agg_ref[...] = jnp.dot(att, wflat_ref[...],
                           preferred_element_type=jnp.float32)


# ---------------------------------------------------------------------------
# Kernel 2: per-sample 2-D convolution (stride 1, "same" padding), tiled over
# output rows.  The padded input window is built in a VMEM scratch (no HBM pad).
# ---------------------------------------------------------------------------
def _conv_kernel(x_ref, w_ref, o_ref, xpad_ref, *, tile_h, W, KH, KW, pad,
                 Cin, Cout, n_h):
    # x_ref:    (1, H, W, Cin)          full unpadded sample (VMEM-resident
    #                                   across the h tiles: constant index_map)
    # w_ref:    (1, KH*KW, Cin, Cout)   this sample's mixed conv weight
    # o_ref:    (1, tile_h, W, Cout)    output row tile
    # xpad_ref: (tile_h+2p, W+2p, Cin)  scratch: zero-padded input window
    h = pl.program_id(1)
    row0 = h * tile_h - pad          # global row of scratch row 0 (may be < 0)

    # Build the zero-padded window for this row tile.  Re-zeroing every step
    # keeps the kernel free of cross-iteration state, so both grid axes can be
    # marked "parallel" (megacore-friendly).
    xpad_ref[...] = jnp.zeros_like(xpad_ref)
    if n_h == 1:
        xpad_ref[pad:pad + tile_h, pad:pad + W, :] = x_ref[0]
    else:
        @pl.when(h == 0)
        def _():
            xpad_ref[pad:, pad:pad + W, :] = x_ref[0, :tile_h + pad, :, :]

        @pl.when(h == n_h - 1)
        def _():
            xpad_ref[:tile_h + pad, pad:pad + W, :] = (
                x_ref[0, pl.ds(row0, tile_h + pad), :, :])

        @pl.when((h > 0) & (h < n_h - 1))
        def _():
            xpad_ref[:, pad:pad + W, :] = (
                x_ref[0, pl.ds(row0, tile_h + 2 * pad), :, :])

    # Sum of KH*KW shifted-window matmuls on the MXU.  The accumulator is
    # bounded by the row tile, so it stays in registers.  (The per-tap slice +
    # reshape touches only a (tile_h, W) block; for large-channel configs a
    # pltpu.roll-based column shift could remove that relayout entirely.)
    acc = jnp.zeros((tile_h * W, Cout), jnp.float32)
    for i in range(KH):
        for j in range(KW):
            patch = xpad_ref[i:i + tile_h, j:j + W, :]        # (tile_h, W, Cin)
            wij = w_ref[0, i * KW + j, :, :]                  # (Cin, Cout)
            acc = acc + jnp.dot(patch.reshape(tile_h * W, Cin), wij,
                                preferred_element_type=jnp.float32)
    o_ref[...] = acc.reshape(1, tile_h, W, Cout).astype(o_ref.dtype)


# ---------------------------------------------------------------------------
# Tiling helpers
# ---------------------------------------------------------------------------
def _pick_tile_m(M, quantum=128, max_tile=2048):
    """Largest multiple-of-`quantum` divisor of M that is <= max_tile.

    Falls back to the whole axis when no such divisor exists (correctness over
    pipeline depth for awkward sizes)."""
    if M <= max_tile:
        return M
    best = None
    t = quantum
    while t <= max_tile:
        if M % t == 0:
            best = t
        t += quantum
    return best if best is not None else M


def _pick_tile_h(H, pad, target=32):
    """Largest divisor of H that is <= target (and >= pad for halo slicing)."""
    best = H
    for t in range(1, H + 1):
        if H % t == 0 and t <= target and t >= max(pad, 1):
            best = t
    return best


# ---------------------------------------------------------------------------
# Public wrapper (NCHW in / NCHW out, matching the PyTorch module)
# ---------------------------------------------------------------------------
def cond_conv_forward(x_nchw, params, *, kernel_size, stride, padding,
                      groups, K, tile_h=None, tile_m_max=2048,
                      compute_dtype=jnp.float32):
    """Pallas implementation of CondConv.forward."""
    assert groups == 1  # TODO(synk): grouped (groups > 1) conv path not implemented.
    # The reference's output.view(N, Cout, H, W) only works when spatial size is
    # preserved -> stride 1 and "same" padding.
    assert stride == 1 and 2 * padding == kernel_size - 1, (
        "CondConv reference requires stride=1 and 2*padding == kernel_size-1")

    N, Cin, H, W = x_nchw.shape
    weight = params["weight"]        # (K, Cout, Cin, kh, kw)
    w_att = params["att_w"]          # (K, Cin)
    b_att = params["att_b"]          # (K,)
    Cout = weight.shape[1]
    KH = KW = kernel_size
    M = KH * KW * Cin * Cout
    pad = padding

    # NHWC so channels sit on the lane dim inside the kernels.
    # TODO(synk): carry NHWC through the surrounding model to drop this transpose.
    x_nhwc = jnp.transpose(x_nchw, (0, 2, 3, 1))

    # Global average pool once in the wrapper: a tiny (N, Cin) result, so the
    # attention kernel never re-reads the full activation tensor from HBM.
    pooled = jnp.mean(x_nchw.astype(jnp.float32), axis=(2, 3))      # (N, Cin)

    # Flatten each expert's weight in (kh, kw, Cin, Cout) order.  The mixing
    # over K is linear, so any consistent flatten order matches PyTorch, and
    # this order makes the (N, M) -> (N, KH*KW, Cin, Cout) reshape free.
    w_flat = jnp.transpose(weight, (0, 3, 4, 2, 1)).reshape(K, M)
    wat = jnp.transpose(w_att, (1, 0))                              # (Cin, K)
    ba = b_att.reshape(1, K)

    # --- Kernel 1: batched attention + expert mixing, grid over M tiles ------
    tile_m = _pick_tile_m(M, quantum=128, max_tile=tile_m_max)
    agg = pl.pallas_call(
        _attn_mix_kernel,
        out_shape=jax.ShapeDtypeStruct((N, M), jnp.float32),
        grid=(M // tile_m,),
        in_specs=[
            pl.BlockSpec((N, Cin), lambda m: (0, 0)),
            pl.BlockSpec((Cin, K), lambda m: (0, 0)),
            pl.BlockSpec((1, K), lambda m: (0, 0)),
            pl.BlockSpec((K, tile_m), lambda m: (0, m)),
        ],
        out_specs=pl.BlockSpec((N, tile_m), lambda m: (0, m)),
        compiler_params=pltpu.CompilerParams(
            dimension_semantics=("parallel",)),
    )(pooled, wat, ba, w_flat)

    agg_w = agg.reshape(N, KH * KW, Cin, Cout).astype(compute_dtype)
    x_in = x_nhwc.astype(compute_dtype)

    # --- Kernel 2: per-sample conv2d, grid over (batch, output-row tiles) ----
    if tile_h is None:
        tile_h = _pick_tile_h(H, pad)
    assert H % tile_h == 0 and tile_h >= pad
    n_h = H // tile_h

    kern = functools.partial(_conv_kernel, tile_h=tile_h, W=W, KH=KH, KW=KW,
                             pad=pad, Cin=Cin, Cout=Cout, n_h=n_h)
    out_nhwc = pl.pallas_call(
        kern,
        out_shape=jax.ShapeDtypeStruct((N, H, W, Cout), jnp.float32),
        grid=(N, n_h),
        in_specs=[
            # Unpadded sample; constant block index across h -> fetched once
            # per sample and kept resident while its row tiles are computed.
            pl.BlockSpec((1, H, W, Cin), lambda n, h: (n, 0, 0, 0)),
            pl.BlockSpec((1, KH * KW, Cin, Cout), lambda n, h: (n, 0, 0, 0)),
        ],
        out_specs=pl.BlockSpec((1, tile_h, W, Cout), lambda n, h: (n, h, 0, 0)),
        scratch_shapes=[
            pltpu.VMEM((tile_h + 2 * pad, W + 2 * pad, Cin), compute_dtype),
        ],
        compiler_params=pltpu.CompilerParams(
            dimension_semantics=("parallel", "parallel")),
    )(x_in, agg_w)

    return jnp.transpose(out_nhwc, (0, 3, 1, 2))                    # back to NCHW


def cond_conv_reference(x_nchw, params, *, kernel_size, stride, padding,
                        groups, K):
    """Pure-JAX reference mirroring the PyTorch forward exactly."""
    N, Cin, H, W = x_nchw.shape
    weight = params["weight"]
    Cout = weight.shape[1]
    pooled = jnp.mean(x_nchw, axis=(2, 3))                    # (N, Cin)
    att = jax.nn.sigmoid(pooled @ params["att_w"].T + params["att_b"])
    agg = att @ weight.reshape(K, -1)                         # (N, Cout*Cin*k*k)
    agg = agg.reshape(N * Cout, Cin // groups, kernel_size, kernel_size)
    x1 = x_nchw.reshape(1, N * Cin, H, W)
    out = jax.lax.conv_general_dilated(
        x1, agg, window_strides=(stride, stride),
        padding=[(padding, padding), (padding, padding)],
        dimension_numbers=("NCHW", "OIHW", "NCHW"),
        feature_group_count=N * groups)
    return out.reshape(N, Cout, H, W)


if __name__ == "__main__":
    # Small, module-consistent shapes.
    N, in_planes, H, W = 2, 4, 16, 16
    out_planes, kernel_size, stride, padding, groups, K = 8, 3, 1, 1, 1, 2

    key = jax.random.PRNGKey(0)
    k1, k2, k3, k4 = jax.random.split(key, 4)
    params = {
        # torch.randn(K, out, in//groups, k, k)
        "weight": jax.random.normal(
            k1, (K, out_planes, in_planes // groups, kernel_size, kernel_size),
            dtype=jnp.float32),
        # Attention 1x1 conv (weight squeezed to (K, Cin)) + bias.
        "att_w": 0.5 * jax.random.normal(k2, (K, in_planes), dtype=jnp.float32),
        "att_b": 0.1 * jax.random.normal(k3, (K,), dtype=jnp.float32),
    }
    x = jax.random.normal(k4, (N, in_planes, H, W), dtype=jnp.float32)

    # tile_h=4 -> 4 row tiles per sample, exercising the first / interior /
    # last halo paths of the conv kernel.
    out = cond_conv_forward(
        x, params, kernel_size=kernel_size, stride=stride, padding=padding,
        groups=groups, K=K, tile_h=4)
    out = jax.block_until_ready(out)

    ref = cond_conv_reference(
        x, params, kernel_size=kernel_size, stride=stride, padding=padding,
        groups=groups, K=K)
    ref = jax.block_until_ready(ref)

    assert out.shape == (N, out_planes, H, W)
    max_err = float(jnp.max(jnp.abs(out - ref)))
    assert bool(jnp.allclose(out, ref, rtol=1e-2, atol=1e-2)), max_err
    print("KERNEL_OK")
</pallas_src>

<mosaic_0001>
module attributes {stable_mosaic.version = 11 : i64} {
  func.func @_attn_mix_kernel(%arg0: i32, %arg1: memref<2x4xf32, #tpu.memory_space<vmem>>, %arg2: memref<4x2xf32, #tpu.memory_space<vmem>>, %arg3: memref<1x2xf32, #tpu.memory_space<vmem>>, %arg4: memref<2x288xf32, #tpu.memory_space<vmem>>, %arg5: memref<2x288xf32, #tpu.memory_space<vmem>>) attributes {dimension_semantics = [#tpu.dimension_semantics<parallel>], iteration_bounds = array<i64: 1>, scalar_prefetch = 0 : i64, scratch_operands = 0 : i64, tpu.core_type = #tpu.core_type<tc>, window_params = [{pipeline_mode = #tpu.pipeline_mode<synchronous>, transform_indices = @transform_0, window_bounds = array<i64: 2, 4>}, {pipeline_mode = #tpu.pipeline_mode<synchronous>, transform_indices = @transform_1, window_bounds = array<i64: 4, 2>}, {pipeline_mode = #tpu.pipeline_mode<synchronous>, transform_indices = @transform_2, window_bounds = array<i64: 1, 2>}, {transform_indices = @transform_3, window_bounds = array<i64: 2, 288>}, {transform_indices = @transform_4, window_bounds = array<i64: 2, 288>}]} {
    %c0 = arith.constant 0 : index
    %c0_0 = arith.constant 0 : index
    %0 = vector.load %arg1[%c0, %c0_0] : memref<2x4xf32, #tpu.memory_space<vmem>>, vector<2x4xf32>
    %c0_1 = arith.constant 0 : index
    %c0_2 = arith.constant 0 : index
    %1 = vector.load %arg2[%c0_1, %c0_2] : memref<4x2xf32, #tpu.memory_space<vmem>>, vector<4x2xf32>
    %cst = arith.constant dense<0.000000e+00> : vector<2x2xf32>
    %2 = tpu.matmul %0, %1, %cst {dimension_numbers = #tpu.dot_dimension_numbers<[1], [0], [0], [1], [0, 0, 1, 1], [], []>} : vector<2x4xf32>, vector<4x2xf32>, vector<2x2xf32> -> vector<2x2xf32>
    %c0_3 = arith.constant 0 : index
    %c0_4 = arith.constant 0 : index
    %3 = vector.load %arg3[%c0_3, %c0_4] : memref<1x2xf32, #tpu.memory_space<vmem>>, vector<1x2xf32>
    %4 = vector.broadcast %3 : vector<1x2xf32> to vector<2x2xf32>
    %5 = arith.addf %2, %4 : vector<2x2xf32>
    %6 = arith.negf %5 : vector<2x2xf32>
    %7 = math.exp %6 : vector<2x2xf32>
    %cst_5 = arith.constant 1.000000e+00 : f32
    %8 = vector.broadcast %cst_5 : f32 to vector<2x2xf32>
    %9 = arith.addf %8, %7 : vector<2x2xf32>
    %10 = arith.divf %8, %9 : vector<2x2xf32>
    %c0_6 = arith.constant 0 : index
    %c0_7 = arith.constant 0 : index
    %11 = vector.load %arg4[%c0_6, %c0_7] : memref<2x288xf32, #tpu.memory_space<vmem>>, vector<2x288xf32>
    %cst_8 = arith.constant dense<0.000000e+00> : vector<2x288xf32>
    %12 = tpu.matmul %10, %11, %cst_8 {dimension_numbers = #tpu.dot_dimension_numbers<[1], [0], [0], [1], [0, 0, 1, 1], [], []>} : vector<2x2xf32>, vector<2x288xf32>, vector<2x288xf32> -> vector<2x288xf32>
    %c0_9 = arith.constant 0 : index
    %c0_10 = arith.constant 0 : index
    %13 = vector.load %arg5[%c0_9, %c0_10] : memref<2x288xf32, #tpu.memory_space<vmem>>, vector<2x288xf32>
    tpu.vector_store %arg5[%c0_9, %c0_10], %12 {strides = array<i32>} : memref<2x288xf32, #tpu.memory_space<vmem>>, vector<2x288xf32>,
    return
  }
  func.func @transform_0(%arg0: i32) -> (i32, i32) {
    %c0_i32 = arith.constant 0 : i32
    %c0_i32_0 = arith.constant 0 : i32
    %c0_i32_1 = arith.constant 0 : i32
    return %c0_i32, %c0_i32_0 : i32, i32
  }
  func.func @transform_1(%arg0: i32) -> (i32, i32) {
    %c0_i32 = arith.constant 0 : i32
    %c0_i32_0 = arith.constant 0 : i32
    %c0_i32_1 = arith.constant 0 : i32
    return %c0_i32, %c0_i32_0 : i32, i32
  }
  func.func @transform_2(%arg0: i32) -> (i32, i32) {
    %c0_i32 = arith.constant 0 : i32
    %c0_i32_0 = arith.constant 0 : i32
    %c0_i32_1 = arith.constant 0 : i32
    return %c0_i32, %c0_i32_0 : i32, i32
  }
  func.func @transform_3(%arg0: i32) -> (i32, i32) {
    %c0_i32 = arith.constant 0 : i32
    %c0_i32_0 = arith.constant 0 : i32
    return %c0_i32, %arg0 : i32, i32
  }
  func.func @transform_4(%arg0: i32) -> (i32, i32) {
    %c0_i32 = arith.constant 0 : i32
    %c0_i32_0 = arith.constant 0 : i32
    return %c0_i32, %arg0 : i32, i32
  }
}

</mosaic_0001>

<llo_original>
// kernel: tpu_custom_call.1
$region0: #{tpu_custom_call.1}
  #allocation0 [shape = 'u32[]', space=smem, size = 0x4, offset = 0x4, fixed_abs, tag = 'smem constant byte address 0x4 - core index']
  #allocation1 [shape = 'u32[144,128]{1,0:T(1,128)}', space=vmem, size = 0x12000, scoped, tag = 'internal scratch']
  %s0 = inlined_call_operand.vmem [shape: f32[2,4], index: 0, kind: input, shape index: {}]
  %s1 = inlined_call_operand.vmem [shape: f32[4,2], index: 1, kind: input, shape index: {}]
  %s2 = inlined_call_operand.vmem [shape: f32[1,2], index: 2, kind: input, shape index: {}]
  %s3 = inlined_call_operand.vmem [shape: f32[2,288], index: 3, kind: input, shape index: {}]
  %s4 = inlined_call_operand.hbm [shape: f32[2,288], index: 4, kind: output, shape index: {}]
  %s5 = sld [smem:[#allocation0]]
  $region26: #{tpu_custom_call.1} parent=0
    _
  %s7 = ssub.s32 1, %s5
  %s8 = scalar_select 0, %s7, %s5
  $region1: #{tpu_custom_call.1} parent=0
    #allocation2 [shape = 'u8[3072]{0}', space=vmem, size = 0xc00, scoped, tag = 'output window, operand 0, single buffered']
    #allocation3 [shape = 's32[1]{0}', space=sflag, size = 0x4, scoped, tag = 'scoped memory for tpu_custom_call.1']
    %9 = vsyncpa [#allocation3], 0
    // Predicated region
    $region2: #{tpu_custom_call.1} parent=1 // pred_check
      _
    $region3: #{tpu_custom_call.1} parent=1 // pred_check_branch
      %11 = sbr.rel (0) target = $region5
    $region4: #{tpu_custom_call.1} parent=1 // pred_region
      _
    $region5: #{tpu_custom_call.1} parent=1 // pred_fallthru
      _
    // Predicated region
    $region6: #{tpu_custom_call.1} parent=1 // pred_check
      _
    $region7: #{tpu_custom_call.1} parent=1 // pred_check_branch
      %13 = sbr.rel (0) target = $region9
    $region8: #{tpu_custom_call.1} parent=1 // pred_region
      _
    $region9: #{tpu_custom_call.1} parent=1 // pred_fallthru
      _
    // Predicated region
    $region10: #{tpu_custom_call.1} parent=1 // pred_check
      _
    $region11: #{tpu_custom_call.1} parent=1 // pred_check_branch
      %15 = sbr.rel (0) target = $region13
    $region12: #{tpu_custom_call.1} parent=1 // pred_region
      _
    $region13: #{tpu_custom_call.1} parent=1 // pred_fallthru
      _
    // Predicated region
    $region14: #{tpu_custom_call.1} parent=1 // pred_check
      _
    $region15: #{tpu_custom_call.1} parent=1 // pred_check_branch
      %17 = sbr.rel (0) target = $region17
    $region16: #{tpu_custom_call.1} parent=1 // pred_region
      _
    $region17: #{tpu_custom_call.1} parent=1 // pred_fallthru
      _
    %v18 = vld [vmem:[%s0] sm:$0x3]
    %v19 = vld [vmem:[%s1] sm:$0xf]
    %v20 = vld [vmem:[%s2] sm:$0x1]
    %v22 = vlaneseq
    %v23 = vshrl.u32 %v22, 7
    %v24 = vsub.s32 0, %v23
    %v25 = vrot.slane %v20, %v24
    %vm27 = vcmask 31744
    %v29 = vsel %vm27, %v18, 0
    %vm31 = vcmask 1043456
    %v33 = vsel %vm31, %v19, 0
    %35 = vmatprep.subr.mxu0 0.0
    %36 = vmatpush1.msra.mxu0 %v33
    %37 = vmatprep.subr.mxu0 0.0
    %38 = vmatpush1.msra.mxu0 0.0
    %39 = vmatprep.subr.mxu0 0.0
    %40 = vmatpush1.msra.mxu0 0.0
    %41 = vmatprep.subr.mxu0 0.0
    %42 = vmatpush1.msra.mxu0 0.0
    %43 = vmatprep.subr.mxu0 0.0
    %44 = vmatpush1.msra.mxu0 0.0
    %45 = vmatprep.subr.mxu0 0.0
    %46 = vmatpush1.msra.mxu0 0.0
    %47 = vmatprep.subr.mxu0 0.0
    %48 = vmatpush1.msra.mxu0 0.0
    %49 = vmatprep.subr.mxu0 0.0
    %50 = vmatpush1.msra.mxu0 0.0
    %51 = vmatprep.subr.mxu0 0.0
    %52 = vmatpush1.msra.mxu0 0.0
    %53 = vmatprep.subr.mxu0 0.0
    %54 = vmatpush1.msra.mxu0 0.0
    %55 = vmatprep.subr.mxu0 0.0
    %56 = vmatpush1.msra.mxu0 0.0
    %57 = vmatprep.subr.mxu0 0.0
    %58 = vmatpush1.msra.mxu0 0.0
    %59 = vmatprep.subr.mxu0 0.0
    %60 = vmatpush1.msra.mxu0 0.0
    %61 = vmatprep.subr.mxu0 0.0
    %62 = vmatpush1.msra.mxu0 0.0
    %63 = vmatprep.subr.mxu0 0.0
    %64 = vmatpush1.msra.mxu0 0.0
    %65 = vmatprep.subr.mxu0 0.0
    %66 = vmatpush1.msra.mxu0 0.0
    %67 = vmatprep.subr.mxu0 0.0
    %68 = vmatpush1.msra.mxu0 0.0
    %69 = vmatprep.subr.mxu0 0.0
    %70 = vmatpush1.msra.mxu0 0.0
    %71 = vmatprep.subr.mxu0 0.0
    %72 = vmatpush1.msra.mxu0 0.0
    %73 = vmatprep.subr.mxu0 0.0
    %74 = vmatpush1.msra.mxu0 0.0
    %75 = vmatprep.subr.mxu0 0.0
    %76 = vmatpush1.msra.mxu0 0.0
    %77 = vmatprep.subr.mxu0 0.0
    %78 = vmatpush1.msra.mxu0 0.0
    %79 = vmatprep.subr.mxu0 0.0
    %80 = vmatpush1.msra.mxu0 0.0
    %81 = vmatprep.subr.mxu0 0.0
    %82 = vmatpush1.msra.mxu0 0.0
    %83 = vmatprep.subr.mxu0 0.0
    %84 = vmatpush1.msra.mxu0 0.0
    %85 = vmatprep.subr.mxu0 0.0
    %86 = vmatpush1.msra.mxu0 0.0
    %87 = vmatprep.subr.mxu0 0.0
    %88 = vmatpush1.msra.mxu0 0.0
    %89 = vmatprep.subr.mxu0 0.0
    %90 = vmatpush1.msra.mxu0 0.0
    %91 = vmatprep.subr.mxu0 0.0
    %92 = vmatpush1.msra.mxu0 0.0
    %93 = vmatprep.subr.mxu0 0.0
    %94 = vmatpush1.msra.mxu0 0.0
    %95 = vmatprep.subr.mxu0 0.0
    %96 = vmatpush1.msra.mxu0 0.0
    %97 = vmatprep.subr.mxu0 0.0
    %98 = vmatpush1.msra.mxu0 0.0
    %99 = vmatprep.mubr.f32.mxu0 0.0
    %100 = vmatmul.mubr.f32.gmra.mrb[0].mxu0 %v29
    %v101 = vpop.f32.mrb[0].mxu0
    %v102 = vadd.f32 %v25, %v101
    %v103 = vpop.f32.mrb[0].mxu0
    %104 = vdwg.mxu0
    %v105 = vxor.u32 %v102, 2147483648
    %v106 = vmul.f32 %v105, 1.442695
    %v107 = vpow.pop %v106
    %v108 = vadd.f32 %v107, 1.0
    %v109 = vrcp.pop %v108
    %v110 = vmul.f32 1.0, %v109
    %v111 = vld [vmem:[%s3] sm:$0x3f]
    %v113 = vcombine.high %v111, %v111
    %v115 = vunpack.c.l.s4 1983009808
    %v116 = vunpack.c.0.s8 %v115
    %v117 = vlaneseq
    %v118 = vshrl.u32 %v117, 7
    %v119 = vsub.s32 %v116, %v118
    %v120 = vrot.slane %v111, %v119
    %v122 = vunpack.c.l.s4 1983009808
    %v123 = vunpack.c.0.s8 %v122
    %v124 = vlaneseq
    %v125 = vshrl.u32 %v124, 7
    %v126 = vsub.s32 %v123, %v125
    %v127 = vrot.slane %v113, %v126
    %v128 = vcombine.high %v120, %v120
    %vm129 = vcmask 15360
    %v131 = vsel %vm129, %v110, 0
    %vm133 = vcmask 1041408
    %v134 = vsel %vm133, %v120, 0
    %v136 = vsel %vm133, %v128, 0
    %v138 = vsel %vm133, %v127, 0
    %140 = vmatprep.subr.mxu0 %v136
    %141 = vmatpush1.msra.mxu0 %v134
    %142 = vmatprep.subr.mxu0 0.0
    %143 = vmatpush1.msra.mxu0 0.0
    %144 = vmatprep.subr.mxu0 0.0
    %145 = vmatpush1.msra.mxu0 0.0
    %146 = vmatprep.subr.mxu0 0.0
    %147 = vmatpush1.msra.mxu0 0.0
    %148 = vmatprep.subr.mxu0 0.0
    %149 = vmatpush1.msra.mxu0 0.0
    %150 = vmatprep.subr.mxu0 0.0
    %151 = vmatpush1.msra.mxu0 0.0
    %152 = vmatprep.subr.mxu0 0.0
    %153 = vmatpush1.msra.mxu0 0.0
    %154 = vmatprep.subr.mxu0 0.0
    %155 = vmatpush1.msra.mxu0 0.0
    %156 = vmatprep.subr.mxu0 0.0
    %157 = vmatpush1.msra.mxu0 0.0
    %158 = vmatprep.subr.mxu0 0.0
    %159 = vmatpush1.msra.mxu0 0.0
    %160 = vmatprep.subr.mxu0 0.0
    %161 = vmatpush1.msra.mxu0 0.0
    %162 = vmatprep.subr.mxu0 0.0
    %163 = vmatpush1.msra.mxu0 0.0
    %164 = vmatprep.subr.mxu0 0.0
    %165 = vmatpush1.msra.mxu0 0.0
    %166 = vmatprep.subr.mxu0 0.0
    %167 = vmatpush1.msra.mxu0 0.0
    %168 = vmatprep.subr.mxu0 0.0
    %169 = vmatpush1.msra.mxu0 0.0
    %170 = vmatprep.subr.mxu0 0.0
    %171 = vmatpush1.msra.mxu0 0.0
    %172 = vmatprep.subr.mxu0 0.0
    %173 = vmatpush1.msra.mxu0 0.0
    %174 = vmatprep.subr.mxu0 0.0
    %175 = vmatpush1.msra.mxu0 0.0
    %176 = vmatprep.subr.mxu0 0.0
    %177 = vmatpush1.msra.mxu0 0.0
    %178 = vmatprep.subr.mxu0 0.0
    %179 = vmatpush1.msra.mxu0 0.0
    %180 = vmatprep.subr.mxu0 0.0
    %181 = vmatpush1.msra.mxu0 0.0
    %182 = vmatprep.subr.mxu0 0.0
    %183 = vmatpush1.msra.mxu0 0.0
    %184 = vmatprep.subr.mxu0 0.0
    %185 = vmatpush1.msra.mxu0 0.0
    %186 = vmatprep.subr.mxu0 0.0
    %187 = vmatpush1.msra.mxu0 0.0
    %188 = vmatprep.subr.mxu0 0.0
    %189 = vmatpush1.msra.mxu0 0.0
    %190 = vmatprep.subr.mxu0 0.0
    %191 = vmatpush1.msra.mxu0 0.0
    %192 = vmatprep.subr.mxu0 0.0
    %193 = vmatpush1.msra.mxu0 0.0
    %194 = vmatprep.subr.mxu0 0.0
    %195 = vmatpush1.msra.mxu0 0.0
    %196 = vmatprep.subr.mxu0 0.0
    %197 = vmatpush1.msra.mxu0 0.0
    %198 = vmatprep.subr.mxu0 0.0
    %199 = vmatpush1.msra.mxu0 0.0
    %200 = vmatprep.subr.mxu0 0.0
    %201 = vmatpush1.msra.mxu0 0.0
    %202 = vmatprep.subr.mxu0 0.0
    %203 = vmatpush1.msra.mxu0 0.0
    %204 = vmatprep.mubr.f32.mxu0 0.0
    %205 = vmatmul.mubr.f32.gmra.mrb[0].mxu0 %v131
    %v206 = vpop.f32.mrb[0].mxu0
    %v207 = vadd.f32 0.0, %v206
    %v208 = vpop.f32.mrb[0].mxu0
    %v209 = vadd.f32 0.0, %v208
    %210 = vdwg.mxu0
    %211 = vmatprep.subr.mxu0 0.0
    %212 = vmatpush1.msra.mxu0 %v138
    %213 = vmatprep.subr.mxu0 0.0
    %214 = vmatpush1.msra.mxu0 0.0
    %215 = vmatprep.subr.mxu0 0.0
    %216 = vmatpush1.msra.mxu0 0.0
    %217 = vmatprep.subr.mxu0 0.0
    %218 = vmatpush1.msra.mxu0 0.0
    %219 = vmatprep.subr.mxu0 0.0
    %220 = vmatpush1.msra.mxu0 0.0
    %221 = vmatprep.subr.mxu0 0.0
    %222 = vmatpush1.msra.mxu0 0.0
    %223 = vmatprep.subr.mxu0 0.0
    %224 = vmatpush1.msra.mxu0 0.0
    %225 = vmatprep.subr.mxu0 0.0
    %226 = vmatpush1.msra.mxu0 0.0
    %227 = vmatprep.subr.mxu0 0.0
    %228 = vmatpush1.msra.mxu0 0.0
    %229 = vmatprep.subr.mxu0 0.0
    %230 = vmatpush1.msra.mxu0 0.0
    %231 = vmatprep.subr.mxu0 0.0
    %232 = vmatpush1.msra.mxu0 0.0
    %233 = vmatprep.subr.mxu0 0.0
    %234 = vmatpush1.msra.mxu0 0.0
    %235 = vmatprep.subr.mxu0 0.0
    %236 = vmatpush1.msra.mxu0 0.0
    %237 = vmatprep.subr.mxu0 0.0
    %238 = vmatpush1.msra.mxu0 0.0
    %239 = vmatprep.subr.mxu0 0.0
    %240 = vmatpush1.msra.mxu0 0.0
    %241 = vmatprep.subr.mxu0 0.0
    %242 = vmatpush1.msra.mxu0 0.0
    %243 = vmatprep.subr.mxu0 0.0
    %244 = vmatpush1.msra.mxu0 0.0
    %245 = vmatprep.subr.mxu0 0.0
    %246 = vmatpush1.msra.mxu0 0.0
    %247 = vmatprep.subr.mxu0 0.0
    %248 = vmatpush1.msra.mxu0 0.0
    %249 = vmatprep.subr.mxu0 0.0
    %250 = vmatpush1.msra.mxu0 0.0
    %251 = vmatprep.subr.mxu0 0.0
    %252 = vmatpush1.msra.mxu0 0.0
    %253 = vmatprep.subr.mxu0 0.0
    %254 = vmatpush1.msra.mxu0 0.0
    %255 = vmatprep.subr.mxu0 0.0
    %256 = vmatpush1.msra.mxu0 0.0
    %257 = vmatprep.subr.mxu0 0.0
    %258 = vmatpush1.msra.mxu0 0.0
    %259 = vmatprep.subr.mxu0 0.0
    %260 = vmatpush1.msra.mxu0 0.0
    %261 = vmatprep.subr.mxu0 0.0
    %262 = vmatpush1.msra.mxu0 0.0
    %263 = vmatprep.subr.mxu0 0.0
    %264 = vmatpush1.msra.mxu0 0.0
    %265 = vmatprep.subr.mxu0 0.0
    %266 = vmatpush1.msra.mxu0 0.0
    %267 = vmatprep.subr.mxu0 0.0
    %268 = vmatpush1.msra.mxu0 0.0
    %269 = vmatprep.subr.mxu0 0.0
    %270 = vmatpush1.msra.mxu0 0.0
    %271 = vmatprep.subr.mxu0 0.0
    %272 = vmatpush1.msra.mxu0 0.0
    %273 = vmatprep.subr.mxu0 0.0
    %274 = vmatpush1.msra.mxu0 0.0
    %275 = vmatprep.mubr.f32.mxu0 0.0
    %276 = vmatmul.mubr.f32.gmra.mrb[0].mxu0 %v131
    %v277 = vpop.f32.mrb[0].mxu0
    %v278 = vadd.f32 0.0, %v277
    %v279 = vpop.f32.mrb[0].mxu0
    %280 = vdwg.mxu0
    %v284 = vcombine.low %v207, %v209
    %v286 = vunpack.c.l.s4 1983009808
    %v287 = vunpack.c.0.s8 %v286
    %v288 = vlaneseq
    %v289 = vshrl.u32 %v288, 7
    %v290 = vsub.s32 %v287, %v289
    %v291 = vrot.slane %v284, %v290
    %v293 = vunpack.c.l.s4 1983009808
    %v294 = vunpack.c.0.s8 %v293
    %v295 = vlaneseq
    %v296 = vshrl.u32 %v295, 7
    %v297 = vsub.s32 %v294, %v296
    %v298 = vrot.slane %v278, %v297
    %v299 = vcombine.low %v291, %v298
    %vm301 = vcmask 1043458
    %vm302 = vmor %vm301, %vm133
    %vm303 = vcmask 259076
    %vm304 = vmor %vm303, %vm302
    %305 = vst.msk [vmem:[#allocation2] sm:$0x3f] %vm304, %v299
    // Predicated region
    $region18: #{tpu_custom_call.1} parent=1 // pred_check
      _
    $region19: #{tpu_custom_call.1} parent=1 // pred_check_branch
      %307 = sbr.rel (0) target = $region21
    $region20: #{tpu_custom_call.1} parent=1 // pred_region
      %s309 = ssub.s32 96, 96
      %310 = vsyncadd [#allocation3], %s309
      %s312 = sshll.u32 [#allocation2], 4
      %s313 = int_to_ptr.vmem [resolvable:$true] %s312
      %315 = dma.vmem_to_hbm [thread:$0]  %s313, 96, %s4, [#allocation3]
    $region21: #{tpu_custom_call.1} parent=1 // pred_fallthru
      _
    // Predicated region
    $region22: #{tpu_custom_call.1} parent=1 // pred_check
      _
    $region23: #{tpu_custom_call.1} parent=1 // pred_check_branch
      %317 = sbr.rel (0) target = $region25
    $region24: #{tpu_custom_call.1} parent=1 // pred_region
      %318 = dma.done [#allocation3], 96
    $region25: #{tpu_custom_call.1} parent=1 // pred_fallthru
      _
    %319 = vsyncpa [#allocation3], 1

</llo_original>
